<compile_context>
chip_gen: v7x
topology: tpu7x:2x2x1
jax: 0.10.0
libtpu: 0.0.40
codegen_flags: <defaults>
</compile_context>

<pallas_src>
import jax
import jax.numpy as jnp
from jax.experimental import pallas as pl
from jax.experimental.pallas import tpu as pltpu


def mlp_kernel(xT_ref, w1_ref, b1_ref, w2_ref, b2_ref, w3_ref, b3_ref, o_ref):
    xT = xT_ref[...]                                            # (F, Bt)
    # layer1: (64, F) @ (F, Bt) + (64, 1) -> ReLU
    h1 = jnp.dot(w1_ref[...], xT, preferred_element_type=jnp.float32)
    h1 = jnp.maximum(h1 + b1_ref[...], 0.0)                     # (64, Bt)
    # layer2: (32, 64) @ (64, Bt) + (32, 1) -> ReLU
    h2 = jnp.dot(w2_ref[...], h1, preferred_element_type=jnp.float32)
    h2 = jnp.maximum(h2 + b2_ref[...], 0.0)                     # (32, Bt)
    # layer3 (N = 1): keep it off the MXU -- VPU multiply + sublane reduce.
    z = jnp.sum(h2 * w3_ref[...], axis=0, keepdims=True)        # (1, Bt)
    z = z + b3_ref[0, 0]                                        # scalar bias (SMEM)
    o_ref[...] = jax.nn.sigmoid(z)                              # lane-dense store


def diabetes_model_forward(x, params, block_b=512):
    """x: (batch, features) float32 -> (batch, 1) float32 (PyTorch semantics)."""
    w1, b1, w2, b2, w3, b3 = params
    B, F = x.shape

    # Batch tile: 512 rows (multiple of 8 and 128) when the batch is large,
    # otherwise a single full-array block (legal via the "== full dims" rule).
    Bt = block_b if B >= block_b else B
    B_pad = ((B + Bt - 1) // Bt) * Bt

    xT = x.T                                                    # (F, B)
    if B_pad != B:
        xT = jnp.pad(xT, ((0, 0), (0, B_pad - B)))              # pad rows -> sliced off

    const = lambda a: pl.BlockSpec(a.shape, lambda i: (0, 0))   # VMEM-resident weights

    out = pl.pallas_call(
        mlp_kernel,
        out_shape=jax.ShapeDtypeStruct((1, B_pad), jnp.float32),
        grid=(B_pad // Bt,),
        in_specs=[
            pl.BlockSpec((F, Bt), lambda i: (0, i)),            # x tile (double-buffered)
            const(w1), const(b1), const(w2), const(b2), const(w3),
            pl.BlockSpec(memory_space=pltpu.MemorySpace.SMEM),  # b3 scalar in SMEM
        ],
        out_specs=pl.BlockSpec((1, Bt), lambda i: (0, i)),      # lane-dense output block
        compiler_params=pltpu.CompilerParams(
            dimension_semantics=("parallel",)),                 # megacore on v7x
    )(xT, w1, b1, w2, b2, w3, b3)                               # (1, B_pad)

    return out[0, :B, None]                                     # (B, 1)


def init_params(key, input_size):
    """PyTorch nn.Linear-style init. Weights in (out, in) layout, biases as
    (out, 1) columns; w3 stored as a (32, 1) column (== layer3.weight.T)."""
    ks = jax.random.split(key, 6)

    def linear(kw, kb, fan_in, fan_out):
        bound = 1.0 / float(fan_in) ** 0.5
        w = jax.random.uniform(kw, (fan_out, fan_in), jnp.float32, -bound, bound)
        b = jax.random.uniform(kb, (fan_out, 1), jnp.float32, -bound, bound)
        return w, b

    w1, b1 = linear(ks[0], ks[1], input_size, 64)
    w2, b2 = linear(ks[2], ks[3], 64, 32)
    w3, b3 = linear(ks[4], ks[5], 32, 1)          # w3: (1, 32), b3: (1, 1)
    return (w1, b1, w2, b2, w3.T, b3)             # store w3 as a (32, 1) column


def reference_forward(x, params):
    w1, b1, w2, b2, w3, b3 = params
    h1 = jnp.maximum(x @ w1.T + b1.T, 0.0)
    h2 = jnp.maximum(h1 @ w2.T + b2.T, 0.0)
    z = jnp.sum(h2 * w3.T, axis=-1, keepdims=True) + b3   # == h2 @ w3
    return jax.nn.sigmoid(z)


if __name__ == "__main__":
    key = jax.random.PRNGKey(0)
    k_x1, k_x2, k_p = jax.random.split(key, 3)

    input_size = 8  # Pima diabetes dataset has 8 features
    params = init_params(k_p, input_size)

    # Small batch: single full-array block, grid == (1,).
    x_small = jax.random.normal(k_x1, (8, input_size), dtype=jnp.float32)
    out_small = jax.block_until_ready(diabetes_model_forward(x_small, params))
    assert out_small.shape == (8, 1)
    assert jnp.allclose(out_small, reference_forward(x_small, params),
                        atol=1e-5, rtol=1e-5)

    # Larger, non-multiple batch: exercises the tiled grid + padding path.
    x_big = jax.random.normal(k_x2, (777, input_size), dtype=jnp.float32)
    out_big = jax.block_until_ready(diabetes_model_forward(x_big, params))
    assert out_big.shape == (777, 1)
    assert jnp.allclose(out_big, reference_forward(x_big, params),
                        atol=1e-5, rtol=1e-5)

    print("KERNEL_OK")
</pallas_src>

<mosaic_0001>
module attributes {stable_mosaic.version = 11 : i64} {
  func.func @mlp_kernel(%arg0: i32, %arg1: memref<8x8xf32, #tpu.memory_space<vmem>>, %arg2: memref<64x8xf32, #tpu.memory_space<vmem>>, %arg3: memref<64x1xf32, #tpu.memory_space<vmem>>, %arg4: memref<32x64xf32, #tpu.memory_space<vmem>>, %arg5: memref<32x1xf32, #tpu.memory_space<vmem>>, %arg6: memref<32x1xf32, #tpu.memory_space<vmem>>, %arg7: memref<1x1xf32, #tpu.memory_space<smem>>, %arg8: memref<1x8xf32, #tpu.memory_space<vmem>>) attributes {dimension_semantics = [#tpu.dimension_semantics<parallel>], iteration_bounds = array<i64: 1>, scalar_prefetch = 0 : i64, scratch_operands = 0 : i64, tpu.core_type = #tpu.core_type<tc>, window_params = [{transform_indices = @transform_0, window_bounds = array<i64: 8, 8>}, {pipeline_mode = #tpu.pipeline_mode<synchronous>, transform_indices = @transform_1, window_bounds = array<i64: 64, 8>}, {pipeline_mode = #tpu.pipeline_mode<synchronous>, transform_indices = @transform_2, window_bounds = array<i64: 64, 1>}, {pipeline_mode = #tpu.pipeline_mode<synchronous>, transform_indices = @transform_3, window_bounds = array<i64: 32, 64>}, {pipeline_mode = #tpu.pipeline_mode<synchronous>, transform_indices = @transform_4, window_bounds = array<i64: 32, 1>}, {pipeline_mode = #tpu.pipeline_mode<synchronous>, transform_indices = @transform_5, window_bounds = array<i64: 32, 1>}, {transform_indices = @transform_6, window_bounds = array<i64: 1, 1>}, {transform_indices = @transform_7, window_bounds = array<i64: 1, 8>}]} {
    %c0 = arith.constant 0 : index
    %c0_0 = arith.constant 0 : index
    %0 = vector.load %arg1[%c0, %c0_0] : memref<8x8xf32, #tpu.memory_space<vmem>>, vector<8x8xf32>
    %c0_1 = arith.constant 0 : index
    %c0_2 = arith.constant 0 : index
    %1 = vector.load %arg2[%c0_1, %c0_2] : memref<64x8xf32, #tpu.memory_space<vmem>>, vector<64x8xf32>
    %cst = arith.constant dense<0.000000e+00> : vector<64x8xf32>
    %2 = tpu.matmul %1, %0, %cst {dimension_numbers = #tpu.dot_dimension_numbers<[1], [0], [0], [1], [0, 0, 1, 1], [], []>} : vector<64x8xf32>, vector<8x8xf32>, vector<64x8xf32> -> vector<64x8xf32>
    %c0_3 = arith.constant 0 : index
    %c0_4 = arith.constant 0 : index
    %3 = vector.load %arg3[%c0_3, %c0_4] : memref<64x1xf32, #tpu.memory_space<vmem>>, vector<64x1xf32>
    %4 = vector.broadcast %3 : vector<64x1xf32> to vector<64x8xf32>
    %5 = arith.addf %2, %4 : vector<64x8xf32>
    %cst_5 = arith.constant 0.000000e+00 : f32
    %6 = vector.broadcast %cst_5 : f32 to vector<64x8xf32>
    %7 = arith.maximumf %5, %6 : vector<64x8xf32>
    %c0_6 = arith.constant 0 : index
    %c0_7 = arith.constant 0 : index
    %8 = vector.load %arg4[%c0_6, %c0_7] : memref<32x64xf32, #tpu.memory_space<vmem>>, vector<32x64xf32>
    %cst_8 = arith.constant dense<0.000000e+00> : vector<32x8xf32>
    %9 = tpu.matmul %8, %7, %cst_8 {dimension_numbers = #tpu.dot_dimension_numbers<[1], [0], [0], [1], [0, 0, 1, 1], [], []>} : vector<32x64xf32>, vector<64x8xf32>, vector<32x8xf32> -> vector<32x8xf32>
    %c0_9 = arith.constant 0 : index
    %c0_10 = arith.constant 0 : index
    %10 = vector.load %arg5[%c0_9, %c0_10] : memref<32x1xf32, #tpu.memory_space<vmem>>, vector<32x1xf32>
    %11 = vector.broadcast %10 : vector<32x1xf32> to vector<32x8xf32>
    %12 = arith.addf %9, %11 : vector<32x8xf32>
    %cst_11 = arith.constant 0.000000e+00 : f32
    %13 = vector.broadcast %cst_11 : f32 to vector<32x8xf32>
    %14 = arith.maximumf %12, %13 : vector<32x8xf32>
    %c0_12 = arith.constant 0 : index
    %c0_13 = arith.constant 0 : index
    %15 = vector.load %arg6[%c0_12, %c0_13] : memref<32x1xf32, #tpu.memory_space<vmem>>, vector<32x1xf32>
    %16 = vector.broadcast %15 : vector<32x1xf32> to vector<32x8xf32>
    %17 = arith.mulf %14, %16 : vector<32x8xf32>
    %cst_14 = arith.constant dense<0.000000e+00> : vector<8xf32>
    %18 = vector.multi_reduction <add>, %17, %cst_14 [0] : vector<32x8xf32> to vector<8xf32>
    %19 = vector.shape_cast %18 : vector<8xf32> to vector<1x8xf32>
    %c0_15 = arith.constant 0 : index
    %c0_16 = arith.constant 0 : index
    %20 = memref.load %arg7[%c0_15, %c0_16] : memref<1x1xf32, #tpu.memory_space<smem>>
    %21 = vector.broadcast %20 : f32 to vector<1x8xf32>
    %22 = arith.addf %19, %21 : vector<1x8xf32>
    %23 = arith.negf %22 : vector<1x8xf32>
    %24 = math.exp %23 : vector<1x8xf32>
    %cst_17 = arith.constant 1.000000e+00 : f32
    %25 = vector.broadcast %cst_17 : f32 to vector<1x8xf32>
    %26 = arith.addf %25, %24 : vector<1x8xf32>
    %27 = arith.divf %25, %26 : vector<1x8xf32>
    %c0_18 = arith.constant 0 : index
    %c0_19 = arith.constant 0 : index
    %28 = vector.load %arg8[%c0_18, %c0_19] : memref<1x8xf32, #tpu.memory_space<vmem>>, vector<1x8xf32>
    tpu.vector_store %arg8[%c0_18, %c0_19], %27 {strides = array<i32>} : memref<1x8xf32, #tpu.memory_space<vmem>>, vector<1x8xf32>,
    return
  }
  func.func @transform_0(%arg0: i32) -> (i32, i32) {
    %c0_i32 = arith.constant 0 : i32
    %c0_i32_0 = arith.constant 0 : i32
    return %c0_i32, %arg0 : i32, i32
  }
  func.func @transform_1(%arg0: i32) -> (i32, i32) {
    %c0_i32 = arith.constant 0 : i32
    %c0_i32_0 = arith.constant 0 : i32
    %c0_i32_1 = arith.constant 0 : i32
    return %c0_i32, %c0_i32_0 : i32, i32
  }
  func.func @transform_2(%arg0: i32) -> (i32, i32) {
    %c0_i32 = arith.constant 0 : i32
    %c0_i32_0 = arith.constant 0 : i32
    %c0_i32_1 = arith.constant 0 : i32
    return %c0_i32, %c0_i32_0 : i32, i32
  }
  func.func @transform_3(%arg0: i32) -> (i32, i32) {
    %c0_i32 = arith.constant 0 : i32
    %c0_i32_0 = arith.constant 0 : i32
    %c0_i32_1 = arith.constant 0 : i32
    return %c0_i32, %c0_i32_0 : i32, i32
  }
  func.func @transform_4(%arg0: i32) -> (i32, i32) {
    %c0_i32 = arith.constant 0 : i32
    %c0_i32_0 = arith.constant 0 : i32
    %c0_i32_1 = arith.constant 0 : i32
    return %c0_i32, %c0_i32_0 : i32, i32
  }
  func.func @transform_5(%arg0: i32) -> (i32, i32) {
    %c0_i32 = arith.constant 0 : i32
    %c0_i32_0 = arith.constant 0 : i32
    %c0_i32_1 = arith.constant 0 : i32
    return %c0_i32, %c0_i32_0 : i32, i32
  }
  func.func @transform_6(%arg0: i32) -> (i32, i32) {
    %c0_i32 = arith.constant 0 : i32
    %c0_i32_0 = arith.constant 0 : i32
    %c0_i32_1 = arith.constant 0 : i32
    return %c0_i32, %c0_i32_0 : i32, i32
  }
  func.func @transform_7(%arg0: i32) -> (i32, i32) {
    %c0_i32 = arith.constant 0 : i32
    %c0_i32_0 = arith.constant 0 : i32
    return %c0_i32, %arg0 : i32, i32
  }
}

</mosaic_0001>

<llo_original>
// kernel: tpu_custom_call.1
$region0: #{tpu_custom_call.1}
  #allocation0 [shape = 'u32[]', space=smem, size = 0x4, offset = 0x4, fixed_abs, tag = 'smem constant byte address 0x4 - core index']
  #allocation1 [shape = 'u32[144,128]{1,0:T(1,128)}', space=vmem, size = 0x12000, scoped, tag = 'internal scratch']
  #allocation2 [shape = 'f32[1,1]{1,0:T(1,128)S(6)}', space=smem, size = 0x200, scoped, tag = 'scoped memory for tpu_custom_call.1']
  %s0 = inlined_call_operand.vmem [shape: f32[8,8], index: 0, kind: input, shape index: {}]
  %s1 = inlined_call_operand.vmem [shape: f32[64,8], index: 1, kind: input, shape index: {}]
  %s2 = inlined_call_operand.vmem [shape: f32[64,1], index: 2, kind: input, shape index: {}]
  %s3 = inlined_call_operand.vmem [shape: f32[32,64], index: 3, kind: input, shape index: {}]
  %s4 = inlined_call_operand.vmem [shape: f32[32,1], index: 4, kind: input, shape index: {}]
  %s5 = inlined_call_operand.vmem [shape: f32[32,1], index: 5, kind: input, shape index: {}]
  %s6 = inlined_call_operand.<no memory space> [shape: f32[1,1], index: 6, kind: input, shape index: {}]
  %s7 = inlined_call_operand.hbm [shape: f32[1,8], index: 7, kind: output, shape index: {}]
  %s8 = sld [smem:[#allocation0]]
  $region38: #{tpu_custom_call.1} parent=0
    _
  %s10 = ssub.s32 1, %s8
  %s11 = scalar_select 0, %s10, %s8
  %12 = sst [smem:[#allocation2]] %s6
  $region1: #{tpu_custom_call.1} parent=0
    #allocation3 [shape = 'u8[512]{0}', space=vmem, size = 0x400, scoped, tag = 'output window, operand 0, single buffered']
    #allocation4 [shape = 's32[1]{0}', space=sflag, size = 0x4, scoped, tag = 'scoped memory for tpu_custom_call.1']
    %13 = vsyncpa [#allocation4], 0
    // Predicated region
    $region2: #{tpu_custom_call.1} parent=1 // pred_check
      _
    $region3: #{tpu_custom_call.1} parent=1 // pred_check_branch
      %15 = sbr.rel (0) target = $region5
    $region4: #{tpu_custom_call.1} parent=1 // pred_region
      _
    $region5: #{tpu_custom_call.1} parent=1 // pred_fallthru
      _
    // Predicated region
    $region6: #{tpu_custom_call.1} parent=1 // pred_check
      _
    $region7: #{tpu_custom_call.1} parent=1 // pred_check_branch
      %17 = sbr.rel (0) target = $region9
    $region8: #{tpu_custom_call.1} parent=1 // pred_region
      _
    $region9: #{tpu_custom_call.1} parent=1 // pred_fallthru
      _
    // Predicated region
    $region10: #{tpu_custom_call.1} parent=1 // pred_check
      _
    $region11: #{tpu_custom_call.1} parent=1 // pred_check_branch
      %19 = sbr.rel (0) target = $region13
    $region12: #{tpu_custom_call.1} parent=1 // pred_region
      _
    $region13: #{tpu_custom_call.1} parent=1 // pred_fallthru
      _
    // Predicated region
    $region14: #{tpu_custom_call.1} parent=1 // pred_check
      _
    $region15: #{tpu_custom_call.1} parent=1 // pred_check_branch
      %21 = sbr.rel (0) target = $region17
    $region16: #{tpu_custom_call.1} parent=1 // pred_region
      _
    $region17: #{tpu_custom_call.1} parent=1 // pred_fallthru
      _
    // Predicated region
    $region18: #{tpu_custom_call.1} parent=1 // pred_check
      _
    $region19: #{tpu_custom_call.1} parent=1 // pred_check_branch
      %23 = sbr.rel (0) target = $region21
    $region20: #{tpu_custom_call.1} parent=1 // pred_region
      _
    $region21: #{tpu_custom_call.1} parent=1 // pred_fallthru
      _
    // Predicated region
    $region22: #{tpu_custom_call.1} parent=1 // pred_check
      _
    $region23: #{tpu_custom_call.1} parent=1 // pred_check_branch
      %25 = sbr.rel (0) target = $region25
    $region24: #{tpu_custom_call.1} parent=1 // pred_region
      _
    $region25: #{tpu_custom_call.1} parent=1 // pred_fallthru
      _
    // Predicated region
    $region26: #{tpu_custom_call.1} parent=1 // pred_check
      _
    $region27: #{tpu_custom_call.1} parent=1 // pred_check_branch
      %27 = sbr.rel (0) target = $region29
    $region28: #{tpu_custom_call.1} parent=1 // pred_region
      _
    $region29: #{tpu_custom_call.1} parent=1 // pred_fallthru
      _
    %v28 = vld [vmem:[%s0] sm:$0xff]
    %v29 = vld [vmem:[%s1] sm:$0xff]
    %v30 = vld [vmem:[%s1 + $0x8] sm:$0xff]
    %v31 = vld [vmem:[%s1 + $0x10] sm:$0xff]
    %v32 = vld [vmem:[%s1 + $0x18] sm:$0xff]
    %v33 = vld [vmem:[%s1 + $0x20] sm:$0xff]
    %v34 = vld [vmem:[%s1 + $0x28] sm:$0xff]
    %v35 = vld [vmem:[%s1 + $0x30] sm:$0xff]
    %v36 = vld [vmem:[%s1 + $0x38] sm:$0xff]
    %v37 = vld [vmem:[%s2] sm:$0xff]
    %v38 = vld [vmem:[%s2 + $0x8] sm:$0xff]
    %v39 = vld [vmem:[%s2 + $0x10] sm:$0xff]
    %v40 = vld [vmem:[%s2 + $0x18] sm:$0xff]
    %v41 = vld [vmem:[%s2 + $0x20] sm:$0xff]
    %v42 = vld [vmem:[%s2 + $0x28] sm:$0xff]
    %v43 = vld [vmem:[%s2 + $0x30] sm:$0xff]
    %v44 = vld [vmem:[%s2 + $0x38] sm:$0xff]
    %46 = vset.pattern.permute.xlu0 0
    %47 = vperm.xlu0 %46, %v37
    %v48 = vpop.permute.xlu0 %47
    %51 = vset.pattern.permute.xlu0 0
    %52 = vperm.xlu0 %51, %v38
    %v53 = vpop.permute.xlu0 %52
    %56 = vset.pattern.permute.xlu0 0
    %57 = vperm.xlu0 %56, %v39
    %v58 = vpop.permute.xlu0 %57
    %61 = vset.pattern.permute.xlu0 0
    %62 = vperm.xlu0 %61, %v40
    %v63 = vpop.permute.xlu0 %62
    %66 = vset.pattern.permute.xlu0 0
    %67 = vperm.xlu0 %66, %v41
    %v68 = vpop.permute.xlu0 %67
    %71 = vset.pattern.permute.xlu0 0
    %72 = vperm.xlu0 %71, %v42
    %v73 = vpop.permute.xlu0 %72
    %76 = vset.pattern.permute.xlu0 0
    %77 = vperm.xlu0 %76, %v43
    %v78 = vpop.permute.xlu0 %77
    %81 = vset.pattern.permute.xlu0 0
    %82 = vperm.xlu0 %81, %v44
    %v83 = vpop.permute.xlu0 %82
    %vm85 = vcmask 64512
    %v87 = vsel %vm85, %v29, 0
    %v90 = vsel %vm85, %v30, 0
    %v93 = vsel %vm85, %v31, 0
    %v96 = vsel %vm85, %v32, 0
    %v99 = vsel %vm85, %v33, 0
    %v102 = vsel %vm85, %v34, 0
    %v105 = vsel %vm85, %v35, 0
    %v108 = vsel %vm85, %v36, 0
    %110 = vmatprep.subr.mxu0 0.0
    %111 = vmatpush1.msra.mxu0 %v28
    %112 = vmatprep.subr.mxu0 0.0
    %113 = vmatpush1.msra.mxu0 0.0
    %114 = vmatprep.subr.mxu0 0.0
    %115 = vmatpush1.msra.mxu0 0.0
    %116 = vmatprep.subr.mxu0 0.0
    %117 = vmatpush1.msra.mxu0 0.0
    %118 = vmatprep.subr.mxu0 0.0
    %119 = vmatpush1.msra.mxu0 0.0
    %120 = vmatprep.subr.mxu0 0.0
    %121 = vmatpush1.msra.mxu0 0.0
    %122 = vmatprep.subr.mxu0 0.0
    %123 = vmatpush1.msra.mxu0 0.0
    %124 = vmatprep.subr.mxu0 0.0
    %125 = vmatpush1.msra.mxu0 0.0
    %126 = vmatprep.subr.mxu0 0.0
    %127 = vmatpush1.msra.mxu0 0.0
    %128 = vmatprep.subr.mxu0 0.0
    %129 = vmatpush1.msra.mxu0 0.0
    %130 = vmatprep.subr.mxu0 0.0
    %131 = vmatpush1.msra.mxu0 0.0
    %132 = vmatprep.subr.mxu0 0.0
    %133 = vmatpush1.msra.mxu0 0.0
    %134 = vmatprep.subr.mxu0 0.0
    %135 = vmatpush1.msra.mxu0 0.0
    %136 = vmatprep.subr.mxu0 0.0
    %137 = vmatpush1.msra.mxu0 0.0
    %138 = vmatprep.subr.mxu0 0.0
    %139 = vmatpush1.msra.mxu0 0.0
    %140 = vmatprep.subr.mxu0 0.0
    %141 = vmatpush1.msra.mxu0 0.0
    %142 = vmatprep.subr.mxu0 0.0
    %143 = vmatpush1.msra.mxu0 0.0
    %144 = vmatprep.subr.mxu0 0.0
    %145 = vmatpush1.msra.mxu0 0.0
    %146 = vmatprep.subr.mxu0 0.0
    %147 = vmatpush1.msra.mxu0 0.0
    %148 = vmatprep.subr.mxu0 0.0
    %149 = vmatpush1.msra.mxu0 0.0
    %150 = vmatprep.subr.mxu0 0.0
    %151 = vmatpush1.msra.mxu0 0.0
    %152 = vmatprep.subr.mxu0 0.0
    %153 = vmatpush1.msra.mxu0 0.0
    %154 = vmatprep.subr.mxu0 0.0
    %155 = vmatpush1.msra.mxu0 0.0
    %156 = vmatprep.subr.mxu0 0.0
    %157 = vmatpush1.msra.mxu0 0.0
    %158 = vmatprep.subr.mxu0 0.0
    %159 = vmatpush1.msra.mxu0 0.0
    %160 = vmatprep.subr.mxu0 0.0
    %161 = vmatpush1.msra.mxu0 0.0
    %162 = vmatprep.subr.mxu0 0.0
    %163 = vmatpush1.msra.mxu0 0.0
    %164 = vmatprep.subr.mxu0 0.0
    %165 = vmatpush1.msra.mxu0 0.0
    %166 = vmatprep.subr.mxu0 0.0
    %167 = vmatpush1.msra.mxu0 0.0
    %168 = vmatprep.subr.mxu0 0.0
    %169 = vmatpush1.msra.mxu0 0.0
    %170 = vmatprep.subr.mxu0 0.0
    %171 = vmatpush1.msra.mxu0 0.0
    %172 = vmatprep.subr.mxu0 0.0
    %173 = vmatpush1.msra.mxu0 0.0
    %174 = vmatprep.mubr.f32.mxu0 0.0
    %175 = vmatmul.mubr.f32.gmra.mrb[0].mxu0 %v87
    %v176 = vpop.f32.mrb[0].mxu0
    %v177 = vadd.f32 %v48, %v176
    %v178 = vpop.f32.mrb[0].mxu0
    %179 = vmatprep.mubr.f32.mxu0 0.0
    %180 = vmatmul.mubr.f32.gmra.mrb[0].mxu0 %v90
    %v181 = vpop.f32.mrb[0].mxu0
    %v182 = vadd.f32 %v53, %v181
    %v183 = vpop.f32.mrb[0].mxu0
    %184 = vmatprep.mubr.f32.mxu0 0.0
    %185 = vmatmul.mubr.f32.gmra.mrb[0].mxu0 %v93
    %v186 = vpop.f32.mrb[0].mxu0
    %v187 = vadd.f32 %v58, %v186
    %v188 = vpop.f32.mrb[0].mxu0
    %189 = vmatprep.mubr.f32.mxu0 0.0
    %190 = vmatmul.mubr.f32.gmra.mrb[0].mxu0 %v96
    %v191 = vpop.f32.mrb[0].mxu0
    %v192 = vadd.f32 %v63, %v191
    %v193 = vpop.f32.mrb[0].mxu0
    %194 = vmatprep.mubr.f32.mxu0 0.0
    %195 = vmatmul.mubr.f32.gmra.mrb[0].mxu0 %v99
    %v196 = vpop.f32.mrb[0].mxu0
    %v197 = vadd.f32 %v68, %v196
    %v198 = vpop.f32.mrb[0].mxu0
    %199 = vmatprep.mubr.f32.mxu0 0.0
    %200 = vmatmul.mubr.f32.gmra.mrb[0].mxu0 %v102
    %v201 = vpop.f32.mrb[0].mxu0
    %v202 = vadd.f32 %v73, %v201
    %v203 = vpop.f32.mrb[0].mxu0
    %204 = vmatprep.mubr.f32.mxu0 0.0
    %205 = vmatmul.mubr.f32.gmra.mrb[0].mxu0 %v105
    %v206 = vpop.f32.mrb[0].mxu0
    %v207 = vadd.f32 %v78, %v206
    %v208 = vpop.f32.mrb[0].mxu0
    %209 = vmatprep.mubr.f32.mxu0 0.0
    %210 = vmatmul.mubr.f32.gmra.mrb[0].mxu0 %v108
    %v211 = vpop.f32.mrb[0].mxu0
    %v212 = vadd.f32 %v83, %v211
    %v213 = vpop.f32.mrb[0].mxu0
    %214 = vdwg.mxu0
    %v215 = vmax.f32 %v177, 0.0
    %v216 = vmax.f32 %v182, 0.0
    %v217 = vmax.f32 %v187, 0.0
    %v218 = vmax.f32 %v192, 0.0
    %v219 = vmax.f32 %v197, 0.0
    %v220 = vmax.f32 %v202, 0.0
    %v221 = vmax.f32 %v207, 0.0
    %v222 = vmax.f32 %v212, 0.0
    %v223 = vld [vmem:[%s3] sm:$0xff]
    %v224 = vld [vmem:[%s3 + $0x8] sm:$0xff]
    %v225 = vld [vmem:[%s3 + $0x10] sm:$0xff]
    %v226 = vld [vmem:[%s3 + $0x18] sm:$0xff]
    %v227 = vld [vmem:[%s4] sm:$0xff]
    %v228 = vld [vmem:[%s4 + $0x8] sm:$0xff]
    %v229 = vld [vmem:[%s4 + $0x10] sm:$0xff]
    %v230 = vld [vmem:[%s4 + $0x18] sm:$0xff]
    %232 = vset.pattern.permute.xlu0 0
    %233 = vperm.xlu0 %232, %v227
    %v234 = vpop.permute.xlu0 %233
    %237 = vset.pattern.permute.xlu0 0
    %238 = vperm.xlu0 %237, %v228
    %v239 = vpop.permute.xlu0 %238
    %242 = vset.pattern.permute.xlu0 0
    %243 = vperm.xlu0 %242, %v229
    %v244 = vpop.permute.xlu0 %243
    %247 = vset.pattern.permute.xlu0 0
    %248 = vperm.xlu0 %247, %v230
    %v249 = vpop.permute.xlu0 %248
    %vm251 = vcmask 523264
    %v253 = vsel %vm251, %v223, 0
    %v256 = vsel %vm251, %v224, 0
    %v259 = vsel %vm251, %v225, 0
    %v262 = vsel %vm251, %v226, 0
    %264 = vmatprep.subr.mxu0 0.0
    %265 = vmatpush1.msra.mxu0 %v215
    %266 = vmatprep.subr.mxu0 0.0
    %267 = vmatpush1.msra.mxu0 %v216
    %268 = vmatprep.subr.mxu0 0.0
    %269 = vmatpush1.msra.mxu0 %v217
    %270 = vmatprep.subr.mxu0 0.0
    %271 = vmatpush1.msra.mxu0 %v218
    %272 = vmatprep.subr.mxu0 0.0
    %273 = vmatpush1.msra.mxu0 %v219
    %274 = vmatprep.subr.mxu0 0.0
    %275 = vmatpush1.msra.mxu0 %v220
    %276 = vmatprep.subr.mxu0 0.0
    %277 = vmatpush1.msra.mxu0 %v221
    %278 = vmatprep.subr.mxu0 0.0
    %279 = vmatpush1.msra.mxu0 %v222
    %280 = vmatprep.subr.mxu0 0.0
    %281 = vmatpush1.msra.mxu0 0.0
    %282 = vmatprep.subr.mxu0 0.0
    %283 = vmatpush1.msra.mxu0 0.0
    %284 = vmatprep.subr.mxu0 0.0
    %285 = vmatpush1.msra.mxu0 0.0
    %286 = vmatprep.subr.mxu0 0.0
    %287 = vmatpush1.msra.mxu0 0.0
    %288 = vmatprep.subr.mxu0 0.0
    %289 = vmatpush1.msra.mxu0 0.0
    %290 = vmatprep.subr.mxu0 0.0
    %291 = vmatpush1.msra.mxu0 0.0
    %292 = vmatprep.subr.mxu0 0.0
    %293 = vmatpush1.msra.mxu0 0.0
    %294 = vmatprep.subr.mxu0 0.0
    %295 = vmatpush1.msra.mxu0 0.0
    %296 = vmatprep.subr.mxu0 0.0
    %297 = vmatpush1.msra.mxu0 0.0
    %298 = vmatprep.subr.mxu0 0.0
    %299 = vmatpush1.msra.mxu0 0.0
    %300 = vmatprep.subr.mxu0 0.0
    %301 = vmatpush1.msra.mxu0 0.0
    %302 = vmatprep.subr.mxu0 0.0
    %303 = vmatpush1.msra.mxu0 0.0
    %304 = vmatprep.subr.mxu0 0.0
    %305 = vmatpush1.msra.mxu0 0.0
    %306 = vmatprep.subr.mxu0 0.0
    %307 = vmatpush1.msra.mxu0 0.0
    %308 = vmatprep.subr.mxu0 0.0
    %309 = vmatpush1.msra.mxu0 0.0
    %310 = vmatprep.subr.mxu0 0.0
    %311 = vmatpush1.msra.mxu0 0.0
    %312 = vmatprep.subr.mxu0 0.0
    %313 = vmatpush1.msra.mxu0 0.0
    %314 = vmatprep.subr.mxu0 0.0
    %315 = vmatpush1.msra.mxu0 0.0
    %316 = vmatprep.subr.mxu0 0.0
    %317 = vmatpush1.msra.mxu0 0.0
    %318 = vmatprep.subr.mxu0 0.0
    %319 = vmatpush1.msra.mxu0 0.0
    %320 = vmatprep.subr.mxu0 0.0
    %321 = vmatpush1.msra.mxu0 0.0
    %322 = vmatprep.subr.mxu0 0.0
    %323 = vmatpush1.msra.mxu0 0.0
    %324 = vmatprep.subr.mxu0 0.0
    %325 = vmatpush1.msra.mxu0 0.0
    %326 = vmatprep.subr.mxu0 0.0
    %327 = vmatpush1.msra.mxu0 0.0
    %328 = vmatprep.mubr.f32.mxu0 0.0
    %329 = vmatmul.mubr.f32.gmra.mrb[0].mxu0 %v253
    %v330 = vpop.f32.mrb[0].mxu0
    %v331 = vadd.f32 %v234, %v330
    %v332 = vpop.f32.mrb[0].mxu0
    %333 = vmatprep.mubr.f32.mxu0 0.0
    %334 = vmatmul.mubr.f32.gmra.mrb[0].mxu0 %v256
    %v335 = vpop.f32.mrb[0].mxu0
    %v336 = vadd.f32 %v239, %v335
    %v337 = vpop.f32.mrb[0].mxu0
    %338 = vmatprep.mubr.f32.mxu0 0.0
    %339 = vmatmul.mubr.f32.gmra.mrb[0].mxu0 %v259
    %v340 = vpop.f32.mrb[0].mxu0
    %v341 = vadd.f32 %v244, %v340
    %v342 = vpop.f32.mrb[0].mxu0
    %343 = vmatprep.mubr.f32.mxu0 0.0
    %344 = vmatmul.mubr.f32.gmra.mrb[0].mxu0 %v262
    %v345 = vpop.f32.mrb[0].mxu0
    %v346 = vadd.f32 %v249, %v345
    %v347 = vpop.f32.mrb[0].mxu0
    %348 = vdwg.mxu0
    %v349 = vmax.f32 %v331, 0.0
    %v350 = vmax.f32 %v336, 0.0
    %v351 = vmax.f32 %v341, 0.0
    %v352 = vmax.f32 %v346, 0.0
    %v353 = vld [vmem:[%s5] sm:$0xff]
    %v354 = vld [vmem:[%s5 + $0x8] sm:$0xff]
    %v355 = vld [vmem:[%s5 + $0x10] sm:$0xff]
    %v356 = vld [vmem:[%s5 + $0x18] sm:$0xff]
    %358 = vset.pattern.permute.xlu0 0
    %359 = vperm.xlu0 %358, %v353
    %v360 = vpop.permute.xlu0 %359
    %363 = vset.pattern.permute.xlu0 0
    %364 = vperm.xlu0 %363, %v354
    %v365 = vpop.permute.xlu0 %364
    %368 = vset.pattern.permute.xlu0 0
    %369 = vperm.xlu0 %368, %v355
    %v370 = vpop.permute.xlu0 %369
    %373 = vset.pattern.permute.xlu0 0
    %374 = vperm.xlu0 %373, %v356
    %v375 = vpop.permute.xlu0 %374
    %v377 = vmul.f32 %v349, %v360
    %v378 = vmul.f32 %v350, %v365
    %v379 = vmul.f32 %v351, %v370
    %v380 = vmul.f32 %v352, %v375
    %v381 = vsel %vm85, %v377, 0.0
    %v382 = vsel %vm85, %v378, 0.0
    %v383 = vadd.f32 %v381, %v382
    %v384 = vsel %vm85, %v379, 0.0
    %v385 = vadd.f32 %v383, %v384
    %v386 = vsel %vm85, %v380, 0.0
    %v387 = vadd.f32 %v385, %v386
    %v388 = vrot.slane %v387, 4
    %v389 = vadd.f32 %v387, %v388
    %v390 = vrot.slane %v389, 2
    %v391 = vadd.f32 %v389, %v390
    %v392 = vrot.slane %v391, 1
    %v393 = vadd.f32 %v391, %v392
    %s394 = sld [smem:[#allocation2]]
    %v395 = vstv %s394
    %v396 = vadd.f32 %v393, %v395
    %v397 = vxor.u32 %v396, 2147483648
    %v398 = vmul.f32 %v397, 1.442695
    %v399 = vpow.pop %v398
    %v400 = vadd.f32 %v399, 1.0
    %v401 = vrcp.pop %v400
    %v402 = vmul.f32 1.0, %v401
    %vm403 = vcmask 57344
    %404 = vst.msk [vmem:[#allocation3] sm:$0x1] %vm403, %v402
    // Predicated region
    $region30: #{tpu_custom_call.1} parent=1 // pred_check
      _
    $region31: #{tpu_custom_call.1} parent=1 // pred_check_branch
      %406 = sbr.rel (0) target = $region33
    $region32: #{tpu_custom_call.1} parent=1 // pred_region
      %s408 = ssub.s32 16, 16
      %409 = vsyncadd [#allocation4], %s408
      %s411 = sshll.u32 [#allocation3], 4
      %s412 = int_to_ptr.vmem [resolvable:$true] %s411
      %414 = dma.vmem_to_hbm [thread:$0]  %s412, 16, %s7, [#allocation4]
    $region33: #{tpu_custom_call.1} parent=1 // pred_fallthru
      _
    // Predicated region
    $region34: #{tpu_custom_call.1} parent=1 // pred_check
      _
    $region35: #{tpu_custom_call.1} parent=1 // pred_check_branch
      %416 = sbr.rel (0) target = $region37
    $region36: #{tpu_custom_call.1} parent=1 // pred_region
      %417 = dma.done [#allocation4], 16
    $region37: #{tpu_custom_call.1} parent=1 // pred_fallthru
      _
    %418 = vsyncpa [#allocation4], 1

</llo_original>
